<compile_context>
chip_gen: v6e
topology: v6e:2x2x1
jax: 0.10.0
libtpu: 0.0.40
codegen_flags: <defaults>
</compile_context>

<pallas_src>
import functools

import jax
import jax.numpy as jnp
from jax.experimental import pallas as pl
from jax.experimental.pallas import tpu as pltpu


# --------------------------------------------------------------------------
# Kernel 1: tiled (A @ F) with fused row-normalization and linear layer.
# Grid = (row_tiles, k_tiles); reduction (k) axis last.
# --------------------------------------------------------------------------
def _agg_linear_kernel(adj_ref, feat_ref, w_ref, b_ref, conv_ref,
                       acc_ref, rowsum_ref):
    k = pl.program_id(1)

    @pl.when(k == 0)
    def _():
        acc_ref[...] = jnp.zeros_like(acc_ref)
        rowsum_ref[...] = jnp.zeros_like(rowsum_ref)

    a = adj_ref[...]                                           # (TM, TK) bf16
    acc_ref[...] += jnp.dot(a, feat_ref[...],
                            preferred_element_type=jnp.float32)
    # accumulate un-normalized row sums (folds the XLA O(N^2) normalize pass
    # into the same tile traversal; XLU reduce hides under the MXU slot).
    rowsum_ref[...] += jnp.sum(a.astype(jnp.float32), axis=1, keepdims=True)

    @pl.when(k == pl.num_programs(1) - 1)
    def _():
        agg = acc_ref[...] * pl.reciprocal(rowsum_ref[...], approx=True)
        conv_ref[...] = (
            jnp.dot(agg, w_ref[...], preferred_element_type=jnp.float32)
            + b_ref[...]
        )


# --------------------------------------------------------------------------
# Kernel 2: global normalization + ELU + residual (elementwise, tiled rows).
# --------------------------------------------------------------------------
def _norm_elu_res_kernel(conv_ref, feat_ref, mean_ref, std_ref, out_ref, *, eps):
    x = conv_ref[...]                                          # (TM, C) f32
    inv = pl.reciprocal(std_ref[...] + eps, approx=True)       # EUP slot
    xn = (x - mean_ref[...]) * inv
    elu = jnp.where(xn > 0, xn, jnp.expm1(jnp.minimum(xn, 0.0)))
    out_ref[...] = (elu + feat_ref[...]) * 0.5


# --------------------------------------------------------------------------
# Pallas wrappers
# --------------------------------------------------------------------------
def _agg_linear(adj_bf16, feat_bf16, w, b, tile):
    n_pad = adj_bf16.shape[0]
    c = feat_bf16.shape[1]
    grid_k = n_pad // tile

    # VMEM budget (double-buffered inputs/outputs + scratch); keep headroom so
    # the same defaults fit v7x's 32 MiB scoped / 64 MiB physical VMEM.
    vmem_bytes = (2 * tile * tile * 2        # adj tiles (bf16)
                  + 2 * tile * c * 2         # feature tiles (bf16)
                  + 2 * (c * c * 4 + c * 4)  # W, b
                  + 2 * tile * c * 4         # conv output tile
                  + tile * c * 4 + tile * 4) # scratch acc + rowsum
    vmem_limit = max(2 * vmem_bytes, 16 * 1024 * 1024)

    return pl.pallas_call(
        _agg_linear_kernel,
        out_shape=jax.ShapeDtypeStruct((n_pad, c), jnp.float32),
        grid_spec=pltpu.PrefetchScalarGridSpec(
            num_scalar_prefetch=0,
            grid=(n_pad // tile, grid_k),
            in_specs=[
                pl.BlockSpec((tile, tile), lambda i, k: (i, k)),   # adj
                pl.BlockSpec((tile, c), lambda i, k: (k, 0)),      # features
                pl.BlockSpec((c, c), lambda i, k: (0, 0)),         # W
                pl.BlockSpec((1, c), lambda i, k: (0, 0)),         # b
            ],
            out_specs=pl.BlockSpec((tile, c), lambda i, k: (i, 0)),
            scratch_shapes=[pltpu.VMEM((tile, c), jnp.float32),
                            pltpu.VMEM((tile, 1), jnp.float32)],
        ),
        compiler_params=pltpu.CompilerParams(
            dimension_semantics=("parallel", "arbitrary"),
            vmem_limit_bytes=int(vmem_limit)),
    )(adj_bf16, feat_bf16, w, b)


def _norm_elu_res(conv_pad, feat_pad, mean, std, eps, tile):
    n_pad, c = conv_pad.shape
    return pl.pallas_call(
        functools.partial(_norm_elu_res_kernel, eps=eps),
        out_shape=jax.ShapeDtypeStruct((n_pad, c), jnp.float32),
        grid_spec=pltpu.PrefetchScalarGridSpec(
            num_scalar_prefetch=0,
            grid=(n_pad // tile,),
            in_specs=[
                pl.BlockSpec((tile, c), lambda i: (i, 0)),   # conv
                pl.BlockSpec((tile, c), lambda i: (i, 0)),   # residual features
                pl.BlockSpec((1, c), lambda i: (0, 0)),      # mean
                pl.BlockSpec((1, c), lambda i: (0, 0)),      # std
            ],
            out_specs=pl.BlockSpec((tile, c), lambda i: (i, 0)),
        ),
        compiler_params=pltpu.CompilerParams(
            dimension_semantics=("parallel",)),
    )(conv_pad, feat_pad, mean, std)


# --------------------------------------------------------------------------
# MetricResBlock (JAX glue around the Pallas kernels)
# --------------------------------------------------------------------------
def init_params(key, n_hidden, metric_n_hidden=32, embedding_dim=3, symmetric=True):
    k1, k2, k3, k4 = jax.random.split(key, 4)
    n_metric_params = 6 if symmetric else 9
    return {
        # metric MLP: embedding_dim -> metric_n_hidden -> n_metric_params
        "mw1": jax.random.normal(k1, (embedding_dim, metric_n_hidden), jnp.float32) * 0.3,
        "mb1": jnp.zeros((1, metric_n_hidden), jnp.float32),
        "mw2": jax.random.normal(k2, (metric_n_hidden, n_metric_params), jnp.float32) * 0.3,
        "mb2": jnp.zeros((1, n_metric_params), jnp.float32),
        # feature linear: n_hidden -> n_hidden (stored as (in, out))
        "w": jax.random.normal(k3, (n_hidden, n_hidden), jnp.float32)
        * (1.0 / jnp.sqrt(n_hidden)),
        "b": jax.random.normal(k4, (1, n_hidden), jnp.float32) * 0.01,
    }


def _params_to_metric(p, symmetric=True):
    """(N, 6|9) -> (N, 3, 3) per-vertex metric tensors."""
    # TODO(synk): `m + m.T` doubles the diagonal; unverified against the
    # unavailable reference MetricConv source (kept from the original impl).
    n = p.shape[0]
    if symmetric:
        iu_r, iu_c = jnp.triu_indices(3)
        m = jnp.zeros((n, 3, 3), jnp.float32).at[:, iu_r, iu_c].set(p)
        return m + jnp.swapaxes(m, 1, 2)
    return p.reshape(n, 3, 3)


def metric_res_block(params, features, vertices, edges, faces, eps=1e-5,
                     symmetric=True, tile=512):
    """Forward pass.  Returns (out_features, metric_per_vertex)."""
    del faces  # connectivity is taken from `edges`
    n, c = features.shape
    n_pad = ((n + tile - 1) // tile) * tile

    # --- MetricConv: per-vertex metric tensor (tiny K=3 MLP; plain XLA) -----
    h = jnp.tanh(vertices @ params["mw1"] + params["mb1"])
    metric_p = h @ params["mw2"] + params["mb2"]
    metric_per_vertex = _params_to_metric(metric_p, symmetric)        # (N,3,3)

    # --- edge weights + dense (padded, un-normalized) adjacency -------------
    # TODO(synk): sparse O(E*C) edge-list aggregation kernel would replace this.
    i, j = edges[:, 0], edges[:, 1]
    d = vertices[j] - vertices[i]                                     # (E,3)
    q_fwd = jnp.einsum("ea,eab,eb->e", d, metric_per_vertex[i], d)
    q_bwd = jnp.einsum("ea,eab,eb->e", d, metric_per_vertex[j], d)
    adj = jnp.zeros((n_pad, n_pad), jnp.float32)
    adj = adj.at[i, j].add(jnp.exp(-jnp.abs(q_fwd)))
    adj = adj.at[j, i].add(jnp.exp(-jnp.abs(q_bwd)))
    adj = adj + jnp.eye(n_pad, dtype=jnp.float32)   # self loop (keeps padded rows non-degenerate)

    feat_pad = jnp.pad(features, ((0, n_pad - n), (0, 0)))

    # --- pass 1: tiled (A @ F) / rowsum @ W + b  (bf16 MXU inputs, f32 acc) --
    conv_pad = _agg_linear(adj.astype(jnp.bfloat16),
                           feat_pad.astype(jnp.bfloat16),
                           params["w"], params["b"], tile)

    # --- global column stats over the valid N rows (tiny O(N*C) reduction) --
    conv_valid = conv_pad[:n]
    mean = jnp.mean(conv_valid, axis=0, keepdims=True)
    ddof = 1 if n > 1 else 0          # torch.std(dim=0) is unbiased
    std = jnp.std(conv_valid, axis=0, ddof=ddof, keepdims=True)

    # --- pass 2: normalize + ELU + residual (tiled elementwise kernel) ------
    out_pad = _norm_elu_res(conv_pad, feat_pad, mean, std, eps, tile)
    return out_pad[:n], metric_per_vertex


# --------------------------------------------------------------------------
# Pure-XLA reference (for a loose numerical sanity check)
# --------------------------------------------------------------------------
def _reference_forward(params, features, vertices, edges, eps=1e-5, symmetric=True):
    n = features.shape[0]
    h = jnp.tanh(vertices @ params["mw1"] + params["mb1"])
    metric = _params_to_metric(h @ params["mw2"] + params["mb2"], symmetric)
    i, j = edges[:, 0], edges[:, 1]
    d = vertices[j] - vertices[i]
    q_fwd = jnp.einsum("ea,eab,eb->e", d, metric[i], d)
    q_bwd = jnp.einsum("ea,eab,eb->e", d, metric[j], d)
    adj = jnp.zeros((n, n), jnp.float32)
    adj = adj.at[i, j].add(jnp.exp(-jnp.abs(q_fwd)))
    adj = adj.at[j, i].add(jnp.exp(-jnp.abs(q_bwd)))
    adj = adj + jnp.eye(n, dtype=jnp.float32)
    adj = adj / jnp.sum(adj, axis=1, keepdims=True)
    conv = adj @ features @ params["w"] + params["b"]
    mean = jnp.mean(conv, axis=0, keepdims=True)
    std = jnp.std(conv, axis=0, ddof=1, keepdims=True)
    x = (conv - mean) / (std + eps)
    x = jnp.where(x > 0, x, jnp.expm1(jnp.minimum(x, 0.0)))
    return (x + features) * 0.5, metric


# --------------------------------------------------------------------------
# Example run
# --------------------------------------------------------------------------
if __name__ == "__main__":
    key = jax.random.PRNGKey(0)
    k_feat, k_vert, k_face, k_param = jax.random.split(key, 4)

    N_VERTS = 300      # not a multiple of the tile -> exercises padding
    N_HIDDEN = 128     # lane-dense output (multiple of 128 -> unmasked stores)
    N_FACES = 200
    TILE = 128         # small demo tile -> 3x3 grid; use 512+ for real meshes

    features = jax.random.normal(k_feat, (N_VERTS, N_HIDDEN), jnp.float32)
    vertices = jax.random.normal(k_vert, (N_VERTS, 3), jnp.float32)
    faces = jax.random.randint(k_face, (N_FACES, 3), 0, N_VERTS, jnp.int32)
    # mesh edges derived from faces (one directed edge per face side)
    edges = jnp.concatenate(
        [faces[:, [0, 1]], faces[:, [1, 2]], faces[:, [2, 0]]], axis=0
    ).astype(jnp.int32)

    params = init_params(k_param, N_HIDDEN)

    out, metric = metric_res_block(params, features, vertices, edges, faces,
                                   tile=TILE)
    jax.block_until_ready(out)
    jax.block_until_ready(metric)

    assert out.shape == (N_VERTS, N_HIDDEN)
    assert metric.shape == (N_VERTS, 3, 3)

    # loose sanity check vs. f32 XLA reference (kernel uses bf16 adjacency +
    # approximate reciprocals, so tolerance is generous)
    ref_out, ref_metric = _reference_forward(params, features, vertices, edges)
    assert float(jnp.max(jnp.abs(out - ref_out))) < 1e-1
    assert float(jnp.max(jnp.abs(metric - ref_metric))) < 1e-4

    print("KERNEL_OK")
</pallas_src>

<mosaic_0001>
module attributes {stable_mosaic.version = 11 : i64} {
  func.func @_agg_linear_kernel(%arg0: i32, %arg1: i32, %arg2: memref<128x128xbf16, #tpu.memory_space<vmem>>, %arg3: memref<128x128xbf16, #tpu.memory_space<vmem>>, %arg4: memref<128x128xf32, #tpu.memory_space<vmem>>, %arg5: memref<1x128xf32, #tpu.memory_space<vmem>>, %arg6: memref<128x128xf32, #tpu.memory_space<vmem>>, %arg7: memref<128x128xf32, #tpu.memory_space<vmem>>, %arg8: memref<128x1xf32, #tpu.memory_space<vmem>>) attributes {dimension_semantics = [#tpu.dimension_semantics<parallel>, #tpu.dimension_semantics<arbitrary>], iteration_bounds = array<i64: 3, 3>, scalar_prefetch = 0 : i64, scratch_operands = 2 : i64, tpu.core_type = #tpu.core_type<tc>, window_params = [{transform_indices = @transform_0, window_bounds = array<i64: 128, 128>}, {transform_indices = @transform_1, window_bounds = array<i64: 128, 128>}, {pipeline_mode = #tpu.pipeline_mode<synchronous>, transform_indices = @transform_2, window_bounds = array<i64: 128, 128>}, {pipeline_mode = #tpu.pipeline_mode<synchronous>, transform_indices = @transform_3, window_bounds = array<i64: 1, 128>}, {transform_indices = @transform_4, window_bounds = array<i64: 128, 128>}]} {
    %c0_i32 = arith.constant 0 : i32
    %0 = arith.cmpi eq, %arg1, %c0_i32 : i32
    %1 = arith.extui %0 : i1 to i32
    %c0_i32_0 = arith.constant 0 : i32
    %2 = arith.cmpi ne, %1, %c0_i32_0 : i32
    scf.if %2 {
      %cst_14 = arith.constant 0.000000e+00 : f32
      %18 = vector.broadcast %cst_14 : f32 to vector<128x128xf32>
      %c0_15 = arith.constant 0 : index
      %c0_16 = arith.constant 0 : index
      %19 = vector.load %arg7[%c0_15, %c0_16] : memref<128x128xf32, #tpu.memory_space<vmem>>, vector<128x128xf32>
      tpu.vector_store %arg7[%c0_15, %c0_16], %18 {strides = array<i32>} : memref<128x128xf32, #tpu.memory_space<vmem>>, vector<128x128xf32>,
      %cst_17 = arith.constant 0.000000e+00 : f32
      %20 = vector.broadcast %cst_17 : f32 to vector<128x1xf32>
      %c0_18 = arith.constant 0 : index
      %c0_19 = arith.constant 0 : index
      %21 = vector.load %arg8[%c0_18, %c0_19] : memref<128x1xf32, #tpu.memory_space<vmem>>, vector<128x1xf32>
      tpu.vector_store %arg8[%c0_18, %c0_19], %20 {strides = array<i32>} : memref<128x1xf32, #tpu.memory_space<vmem>>, vector<128x1xf32>,
    } else {
    }
    %c0 = arith.constant 0 : index
    %c0_1 = arith.constant 0 : index
    %3 = vector.load %arg2[%c0, %c0_1] : memref<128x128xbf16, #tpu.memory_space<vmem>>, vector<128x128xbf16>
    %c0_2 = arith.constant 0 : index
    %c0_3 = arith.constant 0 : index
    %4 = vector.load %arg7[%c0_2, %c0_3] : memref<128x128xf32, #tpu.memory_space<vmem>>, vector<128x128xf32>
    %c0_4 = arith.constant 0 : index
    %c0_5 = arith.constant 0 : index
    %5 = vector.load %arg3[%c0_4, %c0_5] : memref<128x128xbf16, #tpu.memory_space<vmem>>, vector<128x128xbf16>
    %cst = arith.constant dense<0.000000e+00> : vector<128x128xf32>
    %6 = tpu.matmul %3, %5, %cst {dimension_numbers = #tpu.dot_dimension_numbers<[1], [0], [0], [1], [0, 0, 1, 1], [], []>} : vector<128x128xbf16>, vector<128x128xbf16>, vector<128x128xf32> -> vector<128x128xf32>
    %7 = arith.addf %4, %6 : vector<128x128xf32>
    %c0_6 = arith.constant 0 : index
    %c0_7 = arith.constant 0 : index
    %8 = vector.load %arg7[%c0_6, %c0_7] : memref<128x128xf32, #tpu.memory_space<vmem>>, vector<128x128xf32>
    tpu.vector_store %arg7[%c0_6, %c0_7], %7 {strides = array<i32>} : memref<128x128xf32, #tpu.memory_space<vmem>>, vector<128x128xf32>,
    %c0_8 = arith.constant 0 : index
    %c0_9 = arith.constant 0 : index
    %9 = vector.load %arg8[%c0_8, %c0_9] : memref<128x1xf32, #tpu.memory_space<vmem>>, vector<128x1xf32>
    %10 = arith.extf %3 : vector<128x128xbf16> to vector<128x128xf32>
    %cst_10 = arith.constant dense<0.000000e+00> : vector<128xf32>
    %11 = vector.multi_reduction <add>, %10, %cst_10 [1] : vector<128x128xf32> to vector<128xf32>
    %12 = vector.shape_cast %11 : vector<128xf32> to vector<128x1xf32>
    %13 = arith.addf %9, %12 : vector<128x1xf32>
    %c0_11 = arith.constant 0 : index
    %c0_12 = arith.constant 0 : index
    %14 = vector.load %arg8[%c0_11, %c0_12] : memref<128x1xf32, #tpu.memory_space<vmem>>, vector<128x1xf32>
    tpu.vector_store %arg8[%c0_11, %c0_12], %13 {strides = array<i32>} : memref<128x1xf32, #tpu.memory_space<vmem>>, vector<128x1xf32>,
    %c2_i32 = arith.constant 2 : i32
    %15 = arith.cmpi eq, %arg1, %c2_i32 : i32
    %16 = arith.extui %15 : i1 to i32
    %c0_i32_13 = arith.constant 0 : i32
    %17 = arith.cmpi ne, %16, %c0_i32_13 : i32
    scf.if %17 {
      %c0_14 = arith.constant 0 : index
      %c0_15 = arith.constant 0 : index
      %18 = vector.load %arg7[%c0_14, %c0_15] : memref<128x128xf32, #tpu.memory_space<vmem>>, vector<128x128xf32>
      %c0_16 = arith.constant 0 : index
      %c0_17 = arith.constant 0 : index
      %19 = vector.load %arg8[%c0_16, %c0_17] : memref<128x1xf32, #tpu.memory_space<vmem>>, vector<128x1xf32>
      %20 = tpu.reciprocal %19 {approx = true} : vector<128x1xf32> -> vector<128x1xf32>
      %21 = vector.broadcast %20 : vector<128x1xf32> to vector<128x128xf32>
      %22 = arith.mulf %18, %21 : vector<128x128xf32>
      %c0_18 = arith.constant 0 : index
      %c0_19 = arith.constant 0 : index
      %23 = vector.load %arg4[%c0_18, %c0_19] : memref<128x128xf32, #tpu.memory_space<vmem>>, vector<128x128xf32>
      %cst_20 = arith.constant dense<0.000000e+00> : vector<128x128xf32>
      %24 = tpu.matmul %22, %23, %cst_20 {dimension_numbers = #tpu.dot_dimension_numbers<[1], [0], [0], [1], [0, 0, 1, 1], [], []>} : vector<128x128xf32>, vector<128x128xf32>, vector<128x128xf32> -> vector<128x128xf32>
      %c0_21 = arith.constant 0 : index
      %c0_22 = arith.constant 0 : index
      %25 = vector.load %arg5[%c0_21, %c0_22] : memref<1x128xf32, #tpu.memory_space<vmem>>, vector<1x128xf32>
      %26 = vector.broadcast %25 : vector<1x128xf32> to vector<128x128xf32>
      %27 = arith.addf %24, %26 : vector<128x128xf32>
      %c0_23 = arith.constant 0 : index
      %c0_24 = arith.constant 0 : index
      %28 = vector.load %arg6[%c0_23, %c0_24] : memref<128x128xf32, #tpu.memory_space<vmem>>, vector<128x128xf32>
      tpu.vector_store %arg6[%c0_23, %c0_24], %27 {strides = array<i32>} : memref<128x128xf32, #tpu.memory_space<vmem>>, vector<128x128xf32>,
    } else {
    }
    return
  }
  func.func @transform_0(%arg0: i32, %arg1: i32) -> (i32, i32) {
    %c0_i32 = arith.constant 0 : i32
    return %arg0, %arg1 : i32, i32
  }
  func.func @transform_1(%arg0: i32, %arg1: i32) -> (i32, i32) {
    %c0_i32 = arith.constant 0 : i32
    %c0_i32_0 = arith.constant 0 : i32
    return %arg1, %c0_i32 : i32, i32
  }
  func.func @transform_2(%arg0: i32, %arg1: i32) -> (i32, i32) {
    %c0_i32 = arith.constant 0 : i32
    %c0_i32_0 = arith.constant 0 : i32
    %c0_i32_1 = arith.constant 0 : i32
    return %c0_i32, %c0_i32_0 : i32, i32
  }
  func.func @transform_3(%arg0: i32, %arg1: i32) -> (i32, i32) {
    %c0_i32 = arith.constant 0 : i32
    %c0_i32_0 = arith.constant 0 : i32
    %c0_i32_1 = arith.constant 0 : i32
    return %c0_i32, %c0_i32_0 : i32, i32
  }
  func.func @transform_4(%arg0: i32, %arg1: i32) -> (i32, i32) {
    %c0_i32 = arith.constant 0 : i32
    %c0_i32_0 = arith.constant 0 : i32
    return %arg0, %c0_i32 : i32, i32
  }
}

</mosaic_0001>

<llo_original>
// kernel: tpu_custom_call.1
$region0: #{tpu_custom_call.1}
  #allocation0 [shape = 'u32[]', space=smem, size = 0x4, offset = 0x4, fixed_abs, tag = 'smem constant byte address 0x4 - core index']
  #allocation1 [shape = 'u32[144,128]{1,0:T(1,128)}', space=vmem, size = 0x12000, scoped, tag = 'internal scratch']
  #allocation2 [shape = 'f32[128,128]{1,0:T(8,128)}', space=vmem, size = 0x10000, scoped, tag = 'scratch operand']
  #allocation3 [shape = 'f32[128,1]{1,0:T(8,128)}', space=vmem, size = 0x10000, scoped, tag = 'scratch operand']
  %s0 = inlined_call_operand.hbm [shape: bf16[384,384], index: 0, kind: input, shape index: {}]
  %s1 = inlined_call_operand.hbm [shape: bf16[384,128], index: 1, kind: input, shape index: {}]
  %s2 = inlined_call_operand.hbm [shape: f32[128,128], index: 2, kind: input, shape index: {}]
  %s3 = inlined_call_operand.vmem [shape: f32[1,128], index: 3, kind: input, shape index: {}]
  %s4 = inlined_call_operand.hbm [shape: f32[384,128], index: 4, kind: output, shape index: {}]
  %s5 = sld [smem:[#allocation0]]
  $region69: #{tpu_custom_call.1} parent=0
    _
  %s7 = ssub.s32 1, %s5
  %s8 = scalar_select 0, %s7, %s5
  $region1: #{tpu_custom_call.1} parent=0
    #allocation4 [shape = 'u8[65536]{0}', space=vmem, size = 0x10000, scoped, tag = 'input window, operand 0']
    #allocation5 [shape = 's32[2]{0}', space=sflag, size = 0x8, scoped, tag = 'scoped memory for tpu_custom_call.1']
    #allocation6 [shape = 's32[2]{0}', space=sflag, size = 0x8, scoped, tag = 'scoped memory for tpu_custom_call.1']
    #allocation7 [shape = 'u8[65536]{0}', space=vmem, size = 0x10000, scoped, tag = 'input window, operand 1']
    #allocation8 [shape = 's32[2]{0}', space=sflag, size = 0x8, scoped, tag = 'scoped memory for tpu_custom_call.1']
    #allocation9 [shape = 'u8[65536]{0}', space=vmem, size = 0x10000, scoped, tag = 'input window, operand 2, single buffered']
    #allocation10 [shape = 'u8[131072]{0}', space=vmem, size = 0x20000, scoped, tag = 'output window, operand 0']
    %9 = vsyncpa [#allocation5], 0
    %s10 = scalar_lea.sflag [#allocation5], 1
    %11 = vsyncpa %s10, 0
    %12 = vsyncpa [#allocation8], 0
    %s13 = scalar_lea.sflag [#allocation8], 1
    %14 = vsyncpa %s13, 0
    %15 = vsyncpa [#allocation6], 0
    %s16 = scalar_lea.sflag [#allocation6], 1
    %17 = vsyncpa %s16, 0
    loop: start=0, step=1, limit=11
    $region2: #{tpu_custom_call.1} parent=1 // loop_pre_header
      _
    $region3: #{tpu_custom_call.1} parent=1 // loop_header
      %s19 = sphi 0, %s23
      %p20 = scmp.ge.s32.totalorder %s19, 11
      %s26 = sphi 0, %s38
      %s27 = sphi 0, %s34
      %s28 = sphi 0, %s26
      %s29 = sphi 0, %s27
      %s30 = sphi 0, %s28
      %s31 = sphi 0, %s29
      %s43 = sphi 0, %s45
      %s46 = sphi 0, %s43
      %s47 = sphi 0, %s46
      %s63 = sphi 0, %s47
      %s69 = sphi 0, %s71
      %s72 = sphi 0, %s69
      %s73 = sphi 0, %s72
      %s89 = sphi 0, %s73
      %s93 = sphi 0, %s93
      %s95 = sphi 0, %s93
      %s96 = sphi 0, %s95
      %s110 = sphi 0, %s96
      %s114 = sphi 0, %s114
      %s116 = sphi 0, %s114
      %s117 = sphi 0, %s116
      %s131 = sphi 0, %s117
      %s137 = sphi 0, %s139
      %s140 = sphi 0, %s137
      %s141 = sphi 0, %s140
      %s157 = sphi 0, %s141
    $region4: #{tpu_custom_call.1} parent=1 // loop_header_branch
      %22 = sbr.rel (%p20) target = $region8
    $region5: #{tpu_custom_call.1} parent=1 // loop_body
      %s24 = ssub.s32 %s19, 1
      %s25 = ssub.s32 %s19, 2
      %s32 = sadd.s32 1, %s27
      %p33 = scmp.ge.s32.totalorder %s32, 3
      %s34 = scalar_select %p33, 0, %s32
      %s35 = sadd.s32 1, %s26
      %s36 = scalar_select %p33, %s35, %s26
      %p37 = scmp.ge.s32.totalorder %s36, 3
      %s38 = scalar_select %p37, 0, %s36
      %s39 = ssub.s32 %s26, %s38
      %s40 = ssub.s32 %s27, %s34
      %s41 = sor.u32 %s39, %s40
      %p42 = scmp.eq.s32.totalorder %s41, 0
      %s44 = sadd.s32 %s43, 1
      %s45 = scalar_select %p42, %s43, %s44
      %p48 = pneg %p42
      %p49 = scmp.eq.s32.totalorder %s19, 8
      %p50 = por %p48, %p49
      %p51 = scmp.ne.s32.totalorder %s43, %s46
      %p52 = scmp.eq.s32.totalorder %s19, 0
      %p53 = por %p51, %p52
      %p54 = scmp.ne.s32.totalorder %s43, %s46
      %p55 = scmp.eq.s32.totalorder %s24, 8
      %p56 = por %p54, %p55
      %p57 = scmp.ne.s32.totalorder %s46, %s47
      %p58 = scmp.eq.s32.totalorder %s24, 0
      %p59 = por %p57, %p58
      %p60 = scmp.ne.s32.totalorder %s46, %s47
      %p61 = scmp.eq.s32.totalorder %s25, 8
      %p62 = por %p60, %p61
      %p64 = scmp.ne.s32.totalorder %s47, %s63
      %p65 = scmp.eq.s32.totalorder %s25, 0
      %p66 = por %p64, %p65
      %s67 = ssub.s32 %s27, %s34
      %p68 = scmp.eq.s32.totalorder %s67, 0
      %s70 = sadd.s32 %s69, 1
      %s71 = scalar_select %p68, %s69, %s70
      %p74 = pneg %p68
      %p75 = scmp.eq.s32.totalorder %s19, 8
      %p76 = por %p74, %p75
      %p77 = scmp.ne.s32.totalorder %s69, %s72
      %p78 = scmp.eq.s32.totalorder %s19, 0
      %p79 = por %p77, %p78
      %p80 = scmp.ne.s32.totalorder %s69, %s72
      %p81 = scmp.eq.s32.totalorder %s24, 8
      %p82 = por %p80, %p81
      %p83 = scmp.ne.s32.totalorder %s72, %s73
      %p84 = scmp.eq.s32.totalorder %s24, 0
      %p85 = por %p83, %p84
      %p86 = scmp.ne.s32.totalorder %s72, %s73
      %p87 = scmp.eq.s32.totalorder %s25, 8
      %p88 = por %p86, %p87
      %p90 = scmp.ne.s32.totalorder %s73, %s89
      %p91 = scmp.eq.s32.totalorder %s25, 0
      %p92 = por %p90, %p91
      %s94 = sadd.s32 %s93, 1
      %p97 = scmp.eq.s32.totalorder %s19, 8
      %p98 = scmp.ne.s32.totalorder %s93, %s95
      %p99 = scmp.eq.s32.totalorder %s19, 0
      %p100 = por %p98, %p99
      %p101 = scmp.ne.s32.totalorder %s93, %s95
      %p102 = scmp.eq.s32.totalorder %s24, 8
      %p103 = por %p101, %p102
      %p104 = scmp.ne.s32.totalorder %s95, %s96
      %p105 = scmp.eq.s32.totalorder %s24, 0
      %p106 = por %p104, %p105
      %p107 = scmp.ne.s32.totalorder %s95, %s96
      %p108 = scmp.eq.s32.totalorder %s25, 8
      %p109 = por %p107, %p108
      %p111 = scmp.ne.s32.totalorder %s96, %s110
      %p112 = scmp.eq.s32.totalorder %s25, 0
      %p113 = por %p111, %p112
      %s115 = sadd.s32 %s114, 1
      %p118 = scmp.eq.s32.totalorder %s19, 8
      %p119 = scmp.ne.s32.totalorder %s114, %s116
      %p120 = scmp.eq.s32.totalorder %s19, 0
      %p121 = por %p119, %p120
      %p122 = scmp.ne.s32.totalorder %s114, %s116
      %p123 = scmp.eq.s32.totalorder %s24, 8
      %p124 = por %p122, %p123
      %p125 = scmp.ne.s32.totalorder %s116, %s117
      %p126 = scmp.eq.s32.totalorder %s24, 0
      %p127 = por %p125, %p126
      %p128 = scmp.ne.s32.totalorder %s116, %s117
      %p129 = scmp.eq.s32.totalorder %s25, 8
      %p130 = por %p128, %p129
      %p132 = scmp.ne.s32.totalorder %s117, %s131
      %p133 = scmp.eq.s32.totalorder %s25, 0
      %p134 = por %p132, %p133
      %s135 = ssub.s32 %s26, %s38
      %p136 = scmp.eq.s32.totalorder %s135, 0
      %s138 = sadd.s32 %s137, 1
      %s139 = scalar_select %p136, %s137, %s138
      %p142 = pneg %p136
      %p143 = scmp.eq.s32.totalorder %s19, 8
      %p144 = por %p142, %p143
      %p145 = scmp.ne.s32.totalorder %s137, %s140
      %p146 = scmp.eq.s32.totalorder %s19, 0
      %p147 = por %p145, %p146
      %p148 = scmp.ne.s32.totalorder %s137, %s140
      %p149 = scmp.eq.s32.totalorder %s24, 8
      %p150 = por %p148, %p149
      %p151 = scmp.ne.s32.totalorder %s140, %s141
      %p152 = scmp.eq.s32.totalorder %s24, 0
      %p153 = por %p151, %p152
      %p154 = scmp.ne.s32.totalorder %s140, %s141
      %p155 = scmp.eq.s32.totalorder %s25, 8
      %p156 = por %p154, %p155
      %p158 = scmp.ne.s32.totalorder %s141, %s157
      %p159 = scmp.eq.s32.totalorder %s25, 0
      %p160 = por %p158, %p159
      %p161 = scmp.le.s32.totalorder 1, %s19
      %p162 = scmp.lt.s32.totalorder %s19, 10
      %p163 = pnand %p161, %p162
      %p164 = pneg %p163
      // Predicated region
      $region9: #{tpu_custom_call.1} parent=5 // pred_check
        _
      $region10: #{tpu_custom_call.1} parent=5 // pred_check_branch
        %166 = sbr.rel (%p163) target = $region12
      $region11: #{tpu_custom_call.1} parent=5 // pred_region
        %s167 = ssub.s32 %s19, 1
        // Predicated region
        $region13: #{tpu_custom_call.1} parent=11 // pred_check
          %p168 = pneg %p106
        $region14: #{tpu_custom_call.1} parent=11 // pred_check_branch
          %170 = sbr.rel (%p168) target = $region16
        $region15: #{tpu_custom_call.1} parent=11 // pred_region
          %s172 = ssub.s32 2048, 2048
          %173 = vsyncadd [#allocation8], %s172
          %s174 = sshll.u32 [#allocation9], 4
          %s175 = int_to_ptr.vmem [resolvable:$true] %s174
          %180 = dma.hbm_to_vmem [thread:$0]  %s2, 2048, %s175, [#allocation8], 128, 128, 8
        $region16: #{tpu_custom_call.1} parent=11 // pred_fallthru
          _
        // Predicated region
        $region17: #{tpu_custom_call.1} parent=11 // pred_check
          %p181 = pneg %p127
        $region18: #{tpu_custom_call.1} parent=11 // pred_check_branch
          %183 = sbr.rel (%p181) target = $region20
        $region19: #{tpu_custom_call.1} parent=11 // pred_region
          _
        $region20: #{tpu_custom_call.1} parent=11 // pred_fallthru
          _
      $region12: #{tpu_custom_call.1} parent=5 // pred_fallthru
        _
      %p184 = scmp.lt.s32.totalorder %s19, 9
      // Predicated region
      $region21: #{tpu_custom_call.1} parent=5 // pred_check
        %p185 = pneg %p184
      $region22: #{tpu_custom_call.1} parent=5 // pred_check_branch
        %187 = sbr.rel (%p185) target = $region24
      $region23: #{tpu_custom_call.1} parent=5 // pred_region
        // Predicated region
        $region25: #{tpu_custom_call.1} parent=23 // pred_check
          %p188 = pneg %p53
        $region26: #{tpu_custom_call.1} parent=23 // pred_check_branch
          %190 = sbr.rel (%p188) target = $region28
        $region27: #{tpu_custom_call.1} parent=23 // pred_region
          %s191 = sand.u32 %s43, 1
          %s192 = scalar_lea.sflag [#allocation5], %s191
          %s193 = sand.u32 %s43, 1
          %s194 = smul.addr %s193, 64
          %s195 = scalar_lea.vmem [#allocation4], %s194
          %s196 = smul.u32 16, %s26
          %s198 = ssub.s32 1024, 1024
          %199 = vsyncadd %s192, %s198
          %s200 = smul.addr %s196, 3
          %s201 = sadd.s32 %s27, %s200
          %s202 = smul.addr %s201, 64
          %s203 = scalar_lea.hbm %s0, %s202
          %s204 = sshll.u32 %s195, 4
          %s205 = int_to_ptr.vmem [resolvable:$true] %s204
          %210 = dma.hbm_to_vmem [thread:$0]  %s203, 1024, %s205, %s192, 192, 64, 4
        $region28: #{tpu_custom_call.1} parent=23 // pred_fallthru
          _
        // Predicated region
        $region29: #{tpu_custom_call.1} parent=23 // pred_check
          %p211 = pneg %p79
        $region30: #{tpu_custom_call.1} parent=23 // pred_check_branch
          %213 = sbr.rel (%p211) target = $region32
        $region31: #{tpu_custom_call.1} parent=23 // pred_region
          %s214 = sand.u32 %s19, 1
          %s215 = scalar_lea.sflag [#allocation8], %s214
          %s216 = sand.u32 %s69, 1
          %s217 = smul.addr %s216, 64
          %s218 = scalar_lea.vmem [#allocation7], %s217
          %s219 = smul.u32 16, %s27
          %s221 = ssub.s32 1024, 1024
          %222 = vsyncadd %s215, %s221
          %s223 = smul.addr %s219, 64
          %s224 = scalar_lea.hbm %s1, %s223
          %s225 = sshll.u32 %s218, 4
          %s226 = int_to_ptr.vmem [resolvable:$true] %s225
          %231 = dma.hbm_to_vmem [thread:$0]  %s224, 1024, %s226, %s215, 64, 64, 4
        $region32: #{tpu_custom_call.1} parent=23 // pred_fallthru
          _
      $region24: #{tpu_custom_call.1} parent=5 // pred_fallthru
        _
      %p232 = scmp.le.s32.totalorder 1, %s19
      %p233 = scmp.lt.s32.totalorder %s19, 10
      %p234 = pnand %p232, %p233
      %p235 = pneg %p234
      // Predicated region
      $region33: #{tpu_custom_call.1} parent=5 // pred_check
        _
      $region34: #{tpu_custom_call.1} parent=5 // pred_check_branch
        %237 = sbr.rel (%p234) target = $region36
      $region35: #{tpu_custom_call.1} parent=5 // pred_region
        %s238 = ssub.s32 %s19, 1
        %s239 = sand.u32 %s46, 1
        %s240 = scalar_lea.sflag [#allocation5], %s239
        %s241 = sand.u32 %s46, 1
        %s242 = smul.addr %s241, 64
        %s243 = scalar_lea.vmem [#allocation4], %s242
        // Predicated region
        $region37: #{tpu_custom_call.1} parent=35 // pred_check
          %p244 = pneg %p59
        $region38: #{tpu_custom_call.1} parent=35 // pred_check_branch
          %246 = sbr.rel (%p244) target = $region40
        $region39: #{tpu_custom_call.1} parent=35 // pred_region
          %247 = dma.done %s240, 1024
        $region40: #{tpu_custom_call.1} parent=35 // pred_fallthru
          _
        %s248 = sand.u32 %s24, 1
        %s249 = scalar_lea.sflag [#allocation8], %s248
        %s250 = sand.u32 %s72, 1
        %s251 = smul.addr %s250, 64
        %s252 = scalar_lea.vmem [#allocation7], %s251
        // Predicated region
        $region41: #{tpu_custom_call.1} parent=35 // pred_check
          %p253 = pneg %p85
        $region42: #{tpu_custom_call.1} parent=35 // pred_check_branch
          %255 = sbr.rel (%p253) target = $region44
        $region43: #{tpu_custom_call.1} parent=35 // pred_region
          %256 = dma.done %s249, 1024
        $region44: #{tpu_custom_call.1} parent=35 // pred_fallthru
          _
        // Predicated region
        $region45: #{tpu_custom_call.1} parent=35 // pred_check
          %p257 = pneg %p106
        $region46: #{tpu_custom_call.1} parent=35 // pred_check_branch
          %259 = sbr.rel (%p257) target = $region48
        $region47: #{tpu_custom_call.1} parent=35 // pred_region
          %260 = dma.done [#allocation8], 2048
        $region48: #{tpu_custom_call.1} parent=35 // pred_fallthru
          _
        %s261 = sand.u32 %s46, 1
        %s262 = scalar_lea.sflag [#allocation5], %s261
        %s263 = sand.u32 %s46, 1
        %s264 = smul.addr %s263, 64
        %s265 = scalar_lea.vmem [#allocation4], %s264
        %p266 = pneg %p59
        %p267 = pneg %p56
        %s268 = sand.u32 %s24, 1
        %s269 = scalar_lea.sflag [#allocation8], %s268
        %s270 = sand.u32 %s72, 1
        %s271 = smul.addr %s270, 64
        %s272 = scalar_lea.vmem [#allocation7], %s271
        %p273 = pneg %p85
        %p274 = pneg %p82
        %p275 = pneg %p106
        %p276 = pneg %p103
        %p277 = pneg %p127
        %p278 = pneg %p124
        %p279 = pneg %p153
        %p280 = pneg %p150
        %s281 = sand.u32 %s140, 1
        %s282 = scalar_lea.sflag [#allocation6], %s281
        %s283 = sand.u32 %s140, 1
        %s284 = smul.addr %s283, 128
        %s285 = scalar_lea.vmem [#allocation10], %s284
        %s286 = smul.u32 16, %s28
        %s287 = smul.u32 16, %s29
        %s288 = smul.u32 16, %s28
        %p290 = scmp.eq.s32.totalorder %s29, 0
        // Predicated region
        $region49: #{tpu_custom_call.1} parent=35 // pred_check
          %p291 = pneg %p290
        $region50: #{tpu_custom_call.1} parent=35 // pred_check_branch
          %293 = sbr.rel (%p291) target = $region52
        $region51: #{tpu_custom_call.1} parent=35 // pred_region
          %294 = vst [vmem:[#allocation2] sm:$0xff] 0.0
          %295 = vst [vmem:[#allocation2 + $0x8] sm:$0xff] 0.0
          %296 = vst [vmem:[#allocation2 + $0x10] sm:$0xff] 0.0
          %297 = vst [vmem:[#allocation2 + $0x18] sm:$0xff] 0.0
          %298 = vst [vmem:[#allocation2 + $0x20] sm:$0xff] 0.0
          %299 = vst [vmem:[#allocation2 + $0x28] sm:$0xff] 0.0
          %300 = vst [vmem:[#allocation2 + $0x30] sm:$0xff] 0.0
          %301 = vst [vmem:[#allocation2 + $0x38] sm:$0xff] 0.0
          %302 = vst [vmem:[#allocation2 + $0x40] sm:$0xff] 0.0
          %303 = vst [vmem:[#allocation2 + $0x48] sm:$0xff] 0.0
          %304 = vst [vmem:[#allocation2 + $0x50] sm:$0xff] 0.0
          %305 = vst [vmem:[#allocation2 + $0x58] sm:$0xff] 0.0
          %306 = vst [vmem:[#allocation2 + $0x60] sm:$0xff] 0.0
          %307 = vst [vmem:[#allocation2 + $0x68] sm:$0xff] 0.0
          %308 = vst [vmem:[#allocation2 + $0x70] sm:$0xff] 0.0
          %309 = vst [vmem:[#allocation2 + $0x78] sm:$0xff] 0.0
          %vm310 = vcmask 7168
          %311 = vst.msk [vmem:[#allocation3] sm:$0xff] %vm310, 0.0
          %312 = vst.msk [vmem:[#allocation3 + $0x8] sm:$0xff] %vm310, 0.0
          %313 = vst.msk [vmem:[#allocation3 + $0x10] sm:$0xff] %vm310, 0.0
          %314 = vst.msk [vmem:[#allocation3 + $0x18] sm:$0xff] %vm310, 0.0
          %315 = vst.msk [vmem:[#allocation3 + $0x20] sm:$0xff] %vm310, 0.0
          %316 = vst.msk [vmem:[#allocation3 + $0x28] sm:$0xff] %vm310, 0.0
          %317 = vst.msk [vmem:[#allocation3 + $0x30] sm:$0xff] %vm310, 0.0
          %318 = vst.msk [vmem:[#allocation3 + $0x38] sm:$0xff] %vm310, 0.0
          %319 = vst.msk [vmem:[#allocation3 + $0x40] sm:$0xff] %vm310, 0.0
          %320 = vst.msk [vmem:[#allocation3 + $0x48] sm:$0xff] %vm310, 0.0
          %321 = vst.msk [vmem:[#allocation3 + $0x50] sm:$0xff] %vm310, 0.0
          %322 = vst.msk [vmem:[#allocation3 + $0x58] sm:$0xff] %vm310, 0.0
          %323 = vst.msk [vmem:[#allocation3 + $0x60] sm:$0xff] %vm310, 0.0
          %324 = vst.msk [vmem:[#allocation3 + $0x68] sm:$0xff] %vm310, 0.0
          %325 = vst.msk [vmem:[#allocation3 + $0x70] sm:$0xff] %vm310, 0.0
          %326 = vst.msk [vmem:[#allocation3 + $0x78] sm:$0xff] %vm310, 0.0
        $region52: #{tpu_custom_call.1} parent=35 // pred_fallthru
          _
        %v327 = vld [vmem:[%s243] sm:$0xf]
        %v328 = vld [vmem:[%s243 + $0x4] sm:$0xf]
        %v329 = vld [vmem:[%s243 + $0x8] sm:$0xf]
        %v330 = vld [vmem:[%s243 + $0xc] sm:$0xf]
        %v331 = vld [vmem:[%s243 + $0x10] sm:$0xf]
        %v332 = vld [vmem:[%s243 + $0x14] sm:$0xf]
        %v333 = vld [vmem:[%s243 + $0x18] sm:$0xf]
        %v334 = vld [vmem:[%s243 + $0x1c] sm:$0xf]
        %v335 = vld [vmem:[%s243 + $0x20] sm:$0xf]
        %v336 = vld [vmem:[%s243 + $0x24] sm:$0xf]
        %v337 = vld [vmem:[%s243 + $0x28] sm:$0xf]
        %v338 = vld [vmem:[%s243 + $0x2c] sm:$0xf]
        %v339 = vld [vmem:[%s243 + $0x30] sm:$0xf]
        %v340 = vld [vmem:[%s243 + $0x34] sm:$0xf]
        %v341 = vld [vmem:[%s243 + $0x38] sm:$0xf]
        %v342 = vld [vmem:[%s243 + $0x3c] sm:$0xf]
        %v343 = vld [vmem:[#allocation2] sm:$0xff]
        %v344 = vld [vmem:[#allocation2 + $0x8] sm:$0xff]
        %v345 = vld [vmem:[#allocation2 + $0x10] sm:$0xff]
        %v346 = vld [vmem:[#allocation2 + $0x18] sm:$0xff]
        %v347 = vld [vmem:[#allocation2 + $0x20] sm:$0xff]
        %v348 = vld [vmem:[#allocation2 + $0x28] sm:$0xff]
        %v349 = vld [vmem:[#allocation2 + $0x30] sm:$0xff]
        %v350 = vld [vmem:[#allocation2 + $0x38] sm:$0xff]
        %v351 = vld [vmem:[#allocation2 + $0x40] sm:$0xff]
        %v352 = vld [vmem:[#allocation2 + $0x48] sm:$0xff]
        %v353 = vld [vmem:[#allocation2 + $0x50] sm:$0xff]
        %v354 = vld [vmem:[#allocation2 + $0x58] sm:$0xff]
        %v355 = vld [vmem:[#allocation2 + $0x60] sm:$0xff]
        %v356 = vld [vmem:[#allocation2 + $0x68] sm:$0xff]
        %v357 = vld [vmem:[#allocation2 + $0x70] sm:$0xff]
        %v358 = vld [vmem:[#allocation2 + $0x78] sm:$0xff]
        %v359 = vld [vmem:[%s252] sm:$0xf]
        %v360 = vld [vmem:[%s252 + $0x4] sm:$0xf]
        %v361 = vld [vmem:[%s252 + $0x8] sm:$0xf]
        %v362 = vld [vmem:[%s252 + $0xc] sm:$0xf]
        %v363 = vld [vmem:[%s252 + $0x10] sm:$0xf]
        %v364 = vld [vmem:[%s252 + $0x14] sm:$0xf]
        %v365 = vld [vmem:[%s252 + $0x18] sm:$0xf]
        %v366 = vld [vmem:[%s252 + $0x1c] sm:$0xf]
        %v367 = vld [vmem:[%s252 + $0x20] sm:$0xf]
        %v368 = vld [vmem:[%s252 + $0x24] sm:$0xf]
        %v369 = vld [vmem:[%s252 + $0x28] sm:$0xf]
        %v370 = vld [vmem:[%s252 + $0x2c] sm:$0xf]
        %v371 = vld [vmem:[%s252 + $0x30] sm:$0xf]
        %v372 = vld [vmem:[%s252 + $0x34] sm:$0xf]
        %v373 = vld [vmem:[%s252 + $0x38] sm:$0xf]
        %v374 = vld [vmem:[%s252 + $0x3c] sm:$0xf]
        %v391 = vunpack.c.l.b16 %v327
        %v392 = vunpack.c.l.b16 %v328
        %v393 = vunpack.c.l.b16 %v329
        %v394 = vunpack.c.l.b16 %v330
        %v395 = vunpack.c.l.b16 %v331
        %v396 = vunpack.c.l.b16 %v332
        %v397 = vunpack.c.l.b16 %v333
        %v398 = vunpack.c.l.b16 %v334
        %v399 = vunpack.c.l.b16 %v335
        %v400 = vunpack.c.l.b16 %v336
        %v401 = vunpack.c.l.b16 %v337
        %v402 = vunpack.c.l.b16 %v338
        %v403 = vunpack.c.l.b16 %v339
        %v404 = vunpack.c.l.b16 %v340
        %v405 = vunpack.c.l.b16 %v341
        %v406 = vunpack.c.l.b16 %v342
        %v407 = vpack.c.b16 %v392, %v391
        %v408 = vpack.c.b16 %v394, %v393
        %v409 = vpack.c.b16 %v396, %v395
        %v410 = vpack.c.b16 %v398, %v397
        %v411 = vpack.c.b16 %v400, %v399
        %v412 = vpack.c.b16 %v402, %v401
        %v413 = vpack.c.b16 %v404, %v403
        %v414 = vpack.c.b16 %v406, %v405
        %v439 = vunpack.c.l.b16 %v359
        %v440 = vunpack.c.l.b16 %v360
        %v441 = vunpack.c.l.b16 %v361
        %v442 = vunpack.c.l.b16 %v362
        %v443 = vunpack.c.l.b16 %v363
        %v444 = vunpack.c.l.b16 %v364
        %v445 = vunpack.c.l.b16 %v365
        %v446 = vunpack.c.l.b16 %v366
        %v447 = vunpack.c.l.b16 %v367
        %v448 = vunpack.c.l.b16 %v368
        %v449 = vunpack.c.l.b16 %v369
        %v450 = vunpack.c.l.b16 %v370
        %v451 = vunpack.c.l.b16 %v371
        %v452 = vunpack.c.l.b16 %v372
        %v453 = vunpack.c.l.b16 %v373
        %v454 = vunpack.c.l.b16 %v374
        %v455 = vpack.c.b16 %v440, %v439
        %v456 = vpack.c.b16 %v442, %v441
        %v457 = vpack.c.b16 %v444, %v443
        %v458 = vpack.c.b16 %v446, %v445
        %v459 = vpack.c.b16 %v448, %v447
        %v460 = vpack.c.b16 %v450, %v449
        %v461 = vpack.c.b16 %v452, %v451
        %v462 = vpack.c.b16 %v454, %v453
        %471 = vmatprep.subr.bf16.mxu0 0
        %472 = vmatpush1.bf16.msra.mxu0 %v462
        %473 = vmatprep.subr.bf16.mxu0 0
        %474 = vmatpush1.bf16.msra.mxu0 %v461
        %475 = vmatprep.subr.bf16.mxu0 0
        %476 = vmatpush1.bf16.msra.mxu0 %v460
        %477 = vmatprep.subr.bf16.mxu0 0
        %478 = vmatpush1.bf16.msra.mxu0 %v459
        %479 = vmatprep.subr.bf16.mxu0 0
        %480 = vmatpush1.bf16.msra.mxu0 %v458
        %481 = vmatprep.subr.bf16.mxu0 0
        %482 = vmatpush1.bf16.msra.mxu0 %v457
        %483 = vmatprep.subr.bf16.mxu0 0
        %484 = vmatpush1.bf16.msra.mxu0 %v456
        %485 = vmatprep.subr.bf16.mxu0 0
        %486 = vmatpush1.bf16.msra.mxu0 %v455
        %487 = vmatprep.subr.bf16.mxu0 0
        %488 = vmatpush2.bf16.msra.mxu0 0
        %489 = vmatprep.subr.bf16.mxu0 0
        %490 = vmatpush2.bf16.msra.mxu0 0
        %491 = vmatprep.subr.bf16.mxu0 0
        %492 = vmatpush2.bf16.msra.mxu0 0
        %493 = vmatprep.subr.bf16.mxu0 0
        %494 = vmatpush2.bf16.msra.mxu0 0
        %495 = vmatprep.subr.bf16.mxu0 0
        %496 = vmatpush2.bf16.msra.mxu0 0
        %497 = vmatprep.subr.bf16.mxu0 0
        %498 = vmatpush2.bf16.msra.mxu0 0
        %499 = vmatprep.subr.bf16.mxu0 0
        %500 = vmatpush2.bf16.msra.mxu0 0
        %501 = vmatprep.subr.bf16.mxu0 0
        %502 = vmatpush2.bf16.msra.mxu0 0
        %503 = vmatprep.mubr.bf16.mxu0 0
        %504 = vmatmul.mubr.bf16.gmra.mxu0 %v407
        %v505 = vpop.f32.mrf.mxu0
        %v506 = vadd.f32 0.0, %v505
        %v507 = vpop.f32.mrf.mxu0
        %v508 = vpop.f32.mrf.mxu0
        %v509 = vadd.f32 0.0, %v508
        %v510 = vpop.f32.mrf.mxu0
        %511 = vmatprep.mubr.bf16.mxu0 0
        %512 = vmatmul.mubr.bf16.gmra.mxu0 %v408
        %v513 = vpop.f32.mrf.mxu0
        %v514 = vadd.f32 0.0, %v513
        %v515 = vpop.f32.mrf.mxu0
        %v516 = vpop.f32.mrf.mxu0
        %v517 = vadd.f32 0.0, %v516
        %v518 = vpop.f32.mrf.mxu0
        %519 = vmatprep.mubr.bf16.mxu0 0
        %520 = vmatmul.mubr.bf16.gmra.mxu0 %v409
        %v521 = vpop.f32.mrf.mxu0
        %v522 = vadd.f32 0.0, %v521
        %v523 = vpop.f32.mrf.mxu0
        %v524 = vpop.f32.mrf.mxu0
        %v525 = vadd.f32 0.0, %v524
        %v526 = vpop.f32.mrf.mxu0
        %527 = vmatprep.mubr.bf16.mxu0 0
        %528 = vmatmul.mubr.bf16.gmra.mxu0 %v410
        %v529 = vpop.f32.mrf.mxu0
        %v530 = vadd.f32 0.0, %v529
        %v531 = vpop.f32.mrf.mxu0
        %v532 = vpop.f32.mrf.mxu0
        %v533 = vadd.f32 0.0, %v532
        %v534 = vpop.f32.mrf.mxu0
        %535 = vmatprep.mubr.bf16.mxu0 0
        %536 = vmatmul.mubr.bf16.gmra.mxu0 %v411
        %v537 = vpop.f32.mrf.mxu0
        %v538 = vadd.f32 0.0, %v537
        %v539 = vpop.f32.mrf.mxu0
        %v540 = vpop.f32.mrf.mxu0
        %v541 = vadd.f32 0.0, %v540
        %v542 = vpop.f32.mrf.mxu0
        %543 = vmatprep.mubr.bf16.mxu0 0
        %544 = vmatmul.mubr.bf16.gmra.mxu0 %v412
        %v545 = vpop.f32.mrf.mxu0
        %v546 = vadd.f32 0.0, %v545
        %v547 = vpop.f32.mrf.mxu0
        %v548 = vpop.f32.mrf.mxu0
        %v549 = vadd.f32 0.0, %v548
        %v550 = vpop.f32.mrf.mxu0
        %551 = vmatprep.mubr.bf16.mxu0 0
        %552 = vmatmul.mubr.bf16.gmra.mxu0 %v413
        %v553 = vpop.f32.mrf.mxu0
        %v554 = vadd.f32 0.0, %v553
        %v555 = vpop.f32.mrf.mxu0
        %v556 = vpop.f32.mrf.mxu0
        %v557 = vadd.f32 0.0, %v556
        %v558 = vpop.f32.mrf.mxu0
        %559 = vmatprep.mubr.bf16.mxu0 0
        %560 = vmatmul.mubr.bf16.gmra.mxu0 %v414
        %v561 = vpop.f32.mrf.mxu0
        %v562 = vadd.f32 0.0, %v561
        %v563 = vpop.f32.mrf.mxu0
        %v564 = vpop.f32.mrf.mxu0
        %v565 = vadd.f32 0.0, %v564
        %v566 = vpop.f32.mrf.mxu0
        %567 = vdwg.mxu0
        %v568 = vadd.f32 %v343, %v506
        %v569 = vadd.f32 %v344, %v509
        %v570 = vadd.f32 %v345, %v514
        %v571 = vadd.f32 %v346, %v517
        %v572 = vadd.f32 %v347, %v522
        %v573 = vadd.f32 %v348, %v525
        %v574 = vadd.f32 %v349, %v530
        %v575 = vadd.f32 %v350, %v533
        %v576 = vadd.f32 %v351, %v538
        %v577 = vadd.f32 %v352, %v541
        %v578 = vadd.f32 %v353, %v546
        %v579 = vadd.f32 %v354, %v549
        %v580 = vadd.f32 %v355, %v554
        %v581 = vadd.f32 %v356, %v557
        %v582 = vadd.f32 %v357, %v562
        %v583 = vadd.f32 %v358, %v565
        %584 = vst [vmem:[#allocation2] sm:$0xff] %v568
        %585 = vst [vmem:[#allocation2 + $0x8] sm:$0xff] %v569
        %586 = vst [vmem:[#allocation2 + $0x10] sm:$0xff] %v570
        %587 = vst [vmem:[#allocation2 + $0x18] sm:$0xff] %v571
        %588 = vst [vmem:[#allocation2 + $0x20] sm:$0xff] %v572
        %589 = vst [vmem:[#allocation2 + $0x28] sm:$0xff] %v573
        %590 = vst [vmem:[#allocation2 + $0x30] sm:$0xff] %v574
        %591 = vst [vmem:[#allocation2 + $0x38] sm:$0xff] %v575
        %592 = vst [vmem:[#allocation2 + $0x40] sm:$0xff] %v576
        %593 = vst [vmem:[#allocation2 + $0x48] sm:$0xff] %v577
        %594 = vst [vmem:[#allocation2 + $0x50] sm:$0xff] %v578
        %595 = vst [vmem:[#allocation2 + $0x58] sm:$0xff] %v579
        %596 = vst [vmem:[#allocation2 + $0x60] sm:$0xff] %v580
        %597 = vst [vmem:[#allocation2 + $0x68] sm:$0xff] %v581
        %598 = vst [vmem:[#allocation2 + $0x70] sm:$0xff] %v582
        %599 = vst [vmem:[#allocation2 + $0x78] sm:$0xff] %v583
        %v600 = vld [vmem:[#allocation3] sm:$0xff]
        %v601 = vld [vmem:[#allocation3 + $0x8] sm:$0xff]
        %v602 = vld [vmem:[#allocation3 + $0x10] sm:$0xff]
        %v603 = vld [vmem:[#allocation3 + $0x18] sm:$0xff]
        %v604 = vld [vmem:[#allocation3 + $0x20] sm:$0xff]
        %v605 = vld [vmem:[#allocation3 + $0x28] sm:$0xff]
        %v606 = vld [vmem:[#allocation3 + $0x30] sm:$0xff]
        %v607 = vld [vmem:[#allocation3 + $0x38] sm:$0xff]
        %v608 = vld [vmem:[#allocation3 + $0x40] sm:$0xff]
        %v609 = vld [vmem:[#allocation3 + $0x48] sm:$0xff]
        %v610 = vld [vmem:[#allocation3 + $0x50] sm:$0xff]
        %v611 = vld [vmem:[#allocation3 + $0x58] sm:$0xff]
        %v612 = vld [vmem:[#allocation3 + $0x60] sm:$0xff]
        %v613 = vld [vmem:[#allocation3 + $0x68] sm:$0xff]
        %v614 = vld [vmem:[#allocation3 + $0x70] sm:$0xff]
        %v615 = vld [vmem:[#allocation3 + $0x78] sm:$0xff]
        %v616 = vunpack.c.l.bf16 %v327
        %v617 = vunpack.c.l.bf16 %v328
        %v618 = vunpack.c.l.bf16 %v329
        %v619 = vunpack.c.l.bf16 %v330
        %v620 = vunpack.c.l.bf16 %v331
        %v621 = vunpack.c.l.bf16 %v332
        %v622 = vunpack.c.l.bf16 %v333
        %v623 = vunpack.c.l.bf16 %v334
        %v624 = vunpack.c.l.bf16 %v335
        %v625 = vunpack.c.l.bf16 %v336
        %v626 = vunpack.c.l.bf16 %v337
        %v627 = vunpack.c.l.bf16 %v338
        %v628 = vunpack.c.l.bf16 %v339
        %v629 = vunpack.c.l.bf16 %v340
        %v630 = vunpack.c.l.bf16 %v341
        %v631 = vunpack.c.l.bf16 %v342
        %632 = vadd.xlane.f32.xlu0 %v616
        %v633 = vpop.xlane.xlu0 %632
        %634 = vadd.xlane.f32.xlu0 %v617
        %v635 = vpop.xlane.xlu0 %634
        %636 = vadd.xlane.f32.xlu0 %v618
        %v637 = vpop.xlane.xlu0 %636
        %638 = vadd.xlane.f32.xlu0 %v619
        %v639 = vpop.xlane.xlu0 %638
        %640 = vadd.xlane.f32.xlu0 %v620
        %v641 = vpop.xlane.xlu0 %640
        %642 = vadd.xlane.f32.xlu0 %v621
        %v643 = vpop.xlane.xlu0 %642
        %644 = vadd.xlane.f32.xlu0 %v622
        %v645 = vpop.xlane.xlu0 %644
        %646 = vadd.xlane.f32.xlu0 %v623
        %v647 = vpop.xlane.xlu0 %646
        %648 = vadd.xlane.f32.xlu0 %v624
        %v649 = vpop.xlane.xlu0 %648
        %650 = vadd.xlane.f32.xlu0 %v625
        %v651 = vpop.xlane.xlu0 %650
        %652 = vadd.xlane.f32.xlu0 %v626
        %v653 = vpop.xlane.xlu0 %652
        %654 = vadd.xlane.f32.xlu0 %v627
        %v655 = vpop.xlane.xlu0 %654
        %656 = vadd.xlane.f32.xlu0 %v628
        %v657 = vpop.xlane.xlu0 %656
        %658 = vadd.xlane.f32.xlu0 %v629
        %v659 = vpop.xlane.xlu0 %658
        %660 = vadd.xlane.f32.xlu0 %v630
        %v661 = vpop.xlane.xlu0 %660
        %662 = vadd.xlane.f32.xlu0 %v631
        %v663 = vpop.xlane.xlu0 %662
        %v664 = vadd.f32 %v600, %v633
        %v665 = vadd.f32 %v601, %v635
        %v666 = vadd.f32 %v602, %v637
        %v667 = vadd.f32 %v603, %v639
        %v668 = vadd.f32 %v604, %v641
        %v669 = vadd.f32 %v605, %v643
        %v670 = vadd.f32 %v606, %v645
        %v671 = vadd.f32 %v607, %v647
        %v672 = vadd.f32 %v608, %v649
        %v673 = vadd.f32 %v609, %v651
        %v674 = vadd.f32 %v610, %v653
        %v675 = vadd.f32 %v611, %v655
        %v676 = vadd.f32 %v612, %v657
        %v677 = vadd.f32 %v613, %v659
        %v678 = vadd.f32 %v614, %v661
        %v679 = vadd.f32 %v615, %v663
        %vm680 = vcmask 7168
        %681 = vst.msk [vmem:[#allocation3] sm:$0xff] %vm680, %v664
        %682 = vst.msk [vmem:[#allocation3 + $0x8] sm:$0xff] %vm680, %v665
        %683 = vst.msk [vmem:[#allocation3 + $0x10] sm:$0xff] %vm680, %v666
        %684 = vst.msk [vmem:[#allocation3 + $0x18] sm:$0xff] %vm680, %v667
        %685 = vst.msk [vmem:[#allocation3 + $0x20] sm:$0xff] %vm680, %v668
        %686 = vst.msk [vmem:[#allocation3 + $0x28] sm:$0xff] %vm680, %v669
        %687 = vst.msk [vmem:[#allocation3 + $0x30] sm:$0xff] %vm680, %v670
        %688 = vst.msk [vmem:[#allocation3 + $0x38] sm:$0xff] %vm680, %v671
        %689 = vst.msk [vmem:[#allocation3 + $0x40] sm:$0xff] %vm680, %v672
        %690 = vst.msk [vmem:[#allocation3 + $0x48] sm:$0xff] %vm680, %v673
        %691 = vst.msk [vmem:[#allocation3 + $0x50] sm:$0xff] %vm680, %v674
        %692 = vst.msk [vmem:[#allocation3 + $0x58] sm:$0xff] %vm680, %v675
        %693 = vst.msk [vmem:[#allocation3 + $0x60] sm:$0xff] %vm680, %v676
        %694 = vst.msk [vmem:[#allocation3 + $0x68] sm:$0xff] %vm680, %v677
        %695 = vst.msk [vmem:[#allocation3 + $0x70] sm:$0xff] %vm680, %v678
        %696 = vst.msk [vmem:[#allocation3 + $0x78] sm:$0xff] %vm680, %v679
        %p697 = scmp.eq.s32.totalorder %s29, 2
        // Predicated region
        $region53: #{tpu_custom_call.1} parent=35 // pred_check
          %p698 = pneg %p697
        $region54: #{tpu_custom_call.1} parent=35 // pred_check_branch
          %700 = sbr.rel (%p698) target = $region56
        $region55: #{tpu_custom_call.1} parent=35 // pred_region
          %v701 = vld [vmem:[#allocation2] sm:$0xff]
          %v702 = vld [vmem:[#allocation2 + $0x8] sm:$0xff]
          %v703 = vld [vmem:[#allocation2 + $0x10] sm:$0xff]
          %v704 = vld [vmem:[#allocation2 + $0x18] sm:$0xff]
          %v705 = vld [vmem:[#allocation2 + $0x20] sm:$0xff]
          %v706 = vld [vmem:[#allocation2 + $0x28] sm:$0xff]
          %v707 = vld [vmem:[#allocation2 + $0x30] sm:$0xff]
          %v708 = vld [vmem:[#allocation2 + $0x38] sm:$0xff]
          %v709 = vld [vmem:[#allocation2 + $0x40] sm:$0xff]
          %v710 = vld [vmem:[#allocation2 + $0x48] sm:$0xff]
          %v711 = vld [vmem:[#allocation2 + $0x50] sm:$0xff]
          %v712 = vld [vmem:[#allocation2 + $0x58] sm:$0xff]
          %v713 = vld [vmem:[#allocation2 + $0x60] sm:$0xff]
          %v714 = vld [vmem:[#allocation2 + $0x68] sm:$0xff]
          %v715 = vld [vmem:[#allocation2 + $0x70] sm:$0xff]
          %v716 = vld [vmem:[#allocation2 + $0x78] sm:$0xff]
          %v717 = vld [vmem:[#allocation3] sm:$0xff]
          %v718 = vld [vmem:[#allocation3 + $0x8] sm:$0xff]
          %v719 = vld [vmem:[#allocation3 + $0x10] sm:$0xff]
          %v720 = vld [vmem:[#allocation3 + $0x18] sm:$0xff]
          %v721 = vld [vmem:[#allocation3 + $0x20] sm:$0xff]
          %v722 = vld [vmem:[#allocation3 + $0x28] sm:$0xff]
          %v723 = vld [vmem:[#allocation3 + $0x30] sm:$0xff]
          %v724 = vld [vmem:[#allocation3 + $0x38] sm:$0xff]
          %v725 = vld [vmem:[#allocation3 + $0x40] sm:$0xff]
          %v726 = vld [vmem:[#allocation3 + $0x48] sm:$0xff]
          %v727 = vld [vmem:[#allocation3 + $0x50] sm:$0xff]
          %v728 = vld [vmem:[#allocation3 + $0x58] sm:$0xff]
          %v729 = vld [vmem:[#allocation3 + $0x60] sm:$0xff]
          %v730 = vld [vmem:[#allocation3 + $0x68] sm:$0xff]
          %v731 = vld [vmem:[#allocation3 + $0x70] sm:$0xff]
          %v732 = vld [vmem:[#allocation3 + $0x78] sm:$0xff]
          %v733 = vrcp.pop %v717
          %v734 = vrcp.pop %v718
          %v735 = vrcp.pop %v719
          %v736 = vrcp.pop %v720
          %v737 = vrcp.pop %v721
          %v738 = vrcp.pop %v722
          %v739 = vrcp.pop %v723
          %v740 = vrcp.pop %v724
          %v741 = vrcp.pop %v725
          %v742 = vrcp.pop %v726
          %v743 = vrcp.pop %v727
          %v744 = vrcp.pop %v728
          %v745 = vrcp.pop %v729
          %v746 = vrcp.pop %v730
          %v747 = vrcp.pop %v731
          %v748 = vrcp.pop %v732
          %750 = vset.pattern.permute.xlu0 0
          %751 = vperm.xlu0 %750, %v733
          %v752 = vpop.permute.xlu0 %751
          %755 = vset.pattern.permute.xlu0 0
          %756 = vperm.xlu0 %755, %v734
          %v757 = vpop.permute.xlu0 %756
          %760 = vset.pattern.permute.xlu0 0
          %761 = vperm.xlu0 %760, %v735
          %v762 = vpop.permute.xlu0 %761
          %765 = vset.pattern.permute.xlu0 0
          %766 = vperm.xlu0 %765, %v736
          %v767 = vpop.permute.xlu0 %766
          %770 = vset.pattern.permute.xlu0 0
          %771 = vperm.xlu0 %770, %v737
          %v772 = vpop.permute.xlu0 %771
          %775 = vset.pattern.permute.xlu0 0
          %776 = vperm.xlu0 %775, %v738
          %v777 = vpop.permute.xlu0 %776
          %780 = vset.pattern.permute.xlu0 0
          %781 = vperm.xlu0 %780, %v739
          %v782 = vpop.permute.xlu0 %781
          %785 = vset.pattern.permute.xlu0 0
          %786 = vperm.xlu0 %785, %v740
          %v787 = vpop.permute.xlu0 %786
          %790 = vset.pattern.permute.xlu0 0
          %791 = vperm.xlu0 %790, %v741
          %v792 = vpop.permute.xlu0 %791
          %795 = vset.pattern.permute.xlu0 0
          %796 = vperm.xlu0 %795, %v742
          %v797 = vpop.permute.xlu0 %796
          %800 = vset.pattern.permute.xlu0 0
          %801 = vperm.xlu0 %800, %v743
          %v802 = vpop.permute.xlu0 %801
          %805 = vset.pattern.permute.xlu0 0
          %806 = vperm.xlu0 %805, %v744
          %v807 = vpop.permute.xlu0 %806
          %810 = vset.pattern.permute.xlu0 0
          %811 = vperm.xlu0 %810, %v745
          %v812 = vpop.permute.xlu0 %811
          %815 = vset.pattern.permute.xlu0 0
          %816 = vperm.xlu0 %815, %v746
          %v817 = vpop.permute.xlu0 %816
          %820 = vset.pattern.permute.xlu0 0
          %821 = vperm.xlu0 %820, %v747
          %v822 = vpop.permute.xlu0 %821
          %825 = vset.pattern.permute.xlu0 0
          %826 = vperm.xlu0 %825, %v748
          %v827 = vpop.permute.xlu0 %826
          %v829 = vmul.f32 %v701, %v752
          %v830 = vmul.f32 %v702, %v757
          %v831 = vmul.f32 %v703, %v762
          %v832 = vmul.f32 %v704, %v767
          %v833 = vmul.f32 %v705, %v772
          %v834 = vmul.f32 %v706, %v777
          %v835 = vmul.f32 %v707, %v782
          %v836 = vmul.f32 %v708, %v787
          %v837 = vmul.f32 %v709, %v792
          %v838 = vmul.f32 %v710, %v797
          %v839 = vmul.f32 %v711, %v802
          %v840 = vmul.f32 %v712, %v807
          %v841 = vmul.f32 %v713, %v812
          %v842 = vmul.f32 %v714, %v817
          %v843 = vmul.f32 %v715, %v822
          %v844 = vmul.f32 %v716, %v827
          %v845 = vld [vmem:[#allocation9] sm:$0xff]
          %v846 = vld [vmem:[#allocation9 + $0x8] sm:$0xff]
          %v847 = vld [vmem:[#allocation9 + $0x10] sm:$0xff]
          %v848 = vld [vmem:[#allocation9 + $0x18] sm:$0xff]
          %v849 = vld [vmem:[#allocation9 + $0x20] sm:$0xff]
          %v850 = vld [vmem:[#allocation9 + $0x28] sm:$0xff]
          %v851 = vld [vmem:[#allocation9 + $0x30] sm:$0xff]
          %v852 = vld [vmem:[#allocation9 + $0x38] sm:$0xff]
          %v853 = vld [vmem:[#allocation9 + $0x40] sm:$0xff]
          %v854 = vld [vmem:[#allocation9 + $0x48] sm:$0xff]
          %v855 = vld [vmem:[#allocation9 + $0x50] sm:$0xff]
          %v856 = vld [vmem:[#allocation9 + $0x58] sm:$0xff]
          %v857 = vld [vmem:[#allocation9 + $0x60] sm:$0xff]
          %v858 = vld [vmem:[#allocation9 + $0x68] sm:$0xff]
          %v859 = vld [vmem:[#allocation9 + $0x70] sm:$0xff]
          %v860 = vld [vmem:[#allocation9 + $0x78] sm:$0xff]
          %v861 = vld [vmem:[%s3] sm:$0x1]
          %v863 = vlaneseq
          %v864 = vshrl.u32 %v863, 7
          %v865 = vsub.s32 0, %v864
          %v866 = vrot.slane %v861, %v865
          %868 = vmatprep.subr.mxu0 0.0
          %869 = vmatpush1.msra.mxu0 %v860
          %870 = vmatprep.subr.mxu0 0.0
          %871 = vmatpush1.msra.mxu0 %v859
          %872 = vmatprep.subr.mxu0 0.0
          %873 = vmatpush1.msra.mxu0 %v858
          %874 = vmatprep.subr.mxu0 0.0
          %875 = vmatpush1.msra.mxu0 %v857
          %876 = vmatprep.subr.mxu0 0.0
          %877 = vmatpush1.msra.mxu0 %v856
          %878 = vmatprep.subr.mxu0 0.0
          %879 = vmatpush1.msra.mxu0 %v855
          %880 = vmatprep.subr.mxu0 0.0
          %881 = vmatpush1.msra.mxu0 %v854
          %882 = vmatprep.subr.mxu0 0.0
          %883 = vmatpush1.msra.mxu0 %v853
          %884 = vmatprep.subr.mxu0 0.0
          %885 = vmatpush1.msra.mxu0 %v852
          %886 = vmatprep.subr.mxu0 0.0
          %887 = vmatpush1.msra.mxu0 %v851
          %888 = vmatprep.subr.mxu0 0.0
          %889 = vmatpush1.msra.mxu0 %v850
          %890 = vmatprep.subr.mxu0 0.0
          %891 = vmatpush1.msra.mxu0 %v849
          %892 = vmatprep.subr.mxu0 0.0
          %893 = vmatpush1.msra.mxu0 %v848
          %894 = vmatprep.subr.mxu0 0.0
          %895 = vmatpush1.msra.mxu0 %v847
          %896 = vmatprep.subr.mxu0 0.0
          %897 = vmatpush1.msra.mxu0 %v846
          %898 = vmatprep.subr.mxu0 0.0
          %899 = vmatpush1.msra.mxu0 %v845
          %900 = vmatprep.subr.mxu0 0.0
          %901 = vmatpush2.msra.mxu0 0.0
          %902 = vmatprep.subr.mxu0 0.0
          %903 = vmatpush2.msra.mxu0 0.0
          %904 = vmatprep.subr.mxu0 0.0
          %905 = vmatpush2.msra.mxu0 0.0
          %906 = vmatprep.subr.mxu0 0.0
          %907 = vmatpush2.msra.mxu0 0.0
          %908 = vmatprep.subr.mxu0 0.0
          %909 = vmatpush2.msra.mxu0 0.0
          %910 = vmatprep.subr.mxu0 0.0
          %911 = vmatpush2.msra.mxu0 0.0
          %912 = vmatprep.subr.mxu0 0.0
          %913 = vmatpush2.msra.mxu0 0.0
          %914 = vmatprep.subr.mxu0 0.0
          %915 = vmatpush2.msra.mxu0 0.0
          %916 = vmatprep.subr.mxu0 0.0
          %917 = vmatpush2.msra.mxu0 0.0
          %918 = vmatprep.subr.mxu0 0.0
          %919 = vmatpush2.msra.mxu0 0.0
          %920 = vmatprep.subr.mxu0 0.0
          %921 = vmatpush2.msra.mxu0 0.0
          %922 = vmatprep.subr.mxu0 0.0
          %923 = vmatpush2.msra.mxu0 0.0
          %924 = vmatprep.subr.mxu0 0.0
          %925 = vmatpush2.msra.mxu0 0.0
          %926 = vmatprep.subr.mxu0 0.0
          %927 = vmatpush2.msra.mxu0 0.0
          %928 = vmatprep.subr.mxu0 0.0
          %929 = vmatpush2.msra.mxu0 0.0
          %930 = vmatprep.subr.mxu0 0.0
          %931 = vmatpush2.msra.mxu0 0.0
          %932 = vmatprep.mubr.f32.mxu0 0.0
          %933 = vmatmul.mubr.f32.gmra.mxu0 %v829
          %v934 = vpop.f32.mrf.mxu0
          %v935 = vadd.f32 %v866, %v934
          %v936 = vpop.f32.mrf.mxu0
          %937 = vmatprep.mubr.f32.mxu0 0.0
          %938 = vmatmul.mubr.f32.gmra.mxu0 %v830
          %v939 = vpop.f32.mrf.mxu0
          %v940 = vadd.f32 %v866, %v939
          %v941 = vpop.f32.mrf.mxu0
          %942 = vmatprep.mubr.f32.mxu0 0.0
          %943 = vmatmul.mubr.f32.gmra.mxu0 %v831
          %v944 = vpop.f32.mrf.mxu0
          %v945 = vadd.f32 %v866, %v944
          %v946 = vpop.f32.mrf.mxu0
          %947 = vmatprep.mubr.f32.mxu0 0.0
          %948 = vmatmul.mubr.f32.gmra.mxu0 %v832
          %v949 = vpop.f32.mrf.mxu0
          %v950 = vadd.f32 %v866, %v949
          %v951 = vpop.f32.mrf.mxu0
          %952 = vmatprep.mubr.f32.mxu0 0.0
          %953 = vmatmul.mubr.f32.gmra.mxu0 %v833
          %v954 = vpop.f32.mrf.mxu0
          %v955 = vadd.f32 %v866, %v954
          %v956 = vpop.f32.mrf.mxu0
          %957 = vmatprep.mubr.f32.mxu0 0.0
          %958 = vmatmul.mubr.f32.gmra.mxu0 %v834
          %v959 = vpop.f32.mrf.mxu0
          %v960 = vadd.f32 %v866, %v959
          %v961 = vpop.f32.mrf.mxu0
          %962 = vmatprep.mubr.f32.mxu0 0.0
          %963 = vmatmul.mubr.f32.gmra.mxu0 %v835
          %v964 = vpop.f32.mrf.mxu0
          %v965 = vadd.f32 %v866, %v964
          %v966 = vpop.f32.mrf.mxu0
          %967 = vmatprep.mubr.f32.mxu0 0.0
          %968 = vmatmul.mubr.f32.gmra.mxu0 %v836
          %v969 = vpop.f32.mrf.mxu0
          %v970 = vadd.f32 %v866, %v969
          %v971 = vpop.f32.mrf.mxu0
          %972 = vmatprep.mubr.f32.mxu0 0.0
          %973 = vmatmul.mubr.f32.gmra.mxu0 %v837
          %v974 = vpop.f32.mrf.mxu0
          %v975 = vadd.f32 %v866, %v974
          %v976 = vpop.f32.mrf.mxu0
          %977 = vmatprep.mubr.f32.mxu0 0.0
          %978 = vmatmul.mubr.f32.gmra.mxu0 %v838
          %v979 = vpop.f32.mrf.mxu0
          %v980 = vadd.f32 %v866, %v979
          %v981 = vpop.f32.mrf.mxu0
          %982 = vmatprep.mubr.f32.mxu0 0.0
          %983 = vmatmul.mubr.f32.gmra.mxu0 %v839
          %v984 = vpop.f32.mrf.mxu0
          %v985 = vadd.f32 %v866, %v984
          %v986 = vpop.f32.mrf.mxu0
          %987 = vmatprep.mubr.f32.mxu0 0.0
          %988 = vmatmul.mubr.f32.gmra.mxu0 %v840
          %v989 = vpop.f32.mrf.mxu0
          %v990 = vadd.f32 %v866, %v989
          %v991 = vpop.f32.mrf.mxu0
          %992 = vmatprep.mubr.f32.mxu0 0.0
          %993 = vmatmul.mubr.f32.gmra.mxu0 %v841
          %v994 = vpop.f32.mrf.mxu0
          %v995 = vadd.f32 %v866, %v994
          %v996 = vpop.f32.mrf.mxu0
          %997 = vmatprep.mubr.f32.mxu0 0.0
          %998 = vmatmul.mubr.f32.gmra.mxu0 %v842
          %v999 = vpop.f32.mrf.mxu0
          %v1000 = vadd.f32 %v866, %v999
          %v1001 = vpop.f32.mrf.mxu0
          %1002 = vmatprep.mubr.f32.mxu0 0.0
          %1003 = vmatmul.mubr.f32.gmra.mxu0 %v843
          %v1004 = vpop.f32.mrf.mxu0
          %v1005 = vadd.f32 %v866, %v1004
          %v1006 = vpop.f32.mrf.mxu0
          %1007 = vmatprep.mubr.f32.mxu0 0.0
          %1008 = vmatmul.mubr.f32.gmra.mxu0 %v844
          %v1009 = vpop.f32.mrf.mxu0
          %v1010 = vadd.f32 %v866, %v1009
          %v1011 = vpop.f32.mrf.mxu0
          %1012 = vdwg.mxu0
          %1013 = vst [vmem:[%s285] sm:$0xff] %v935
          %1014 = vst [vmem:[%s285 + $0x8] sm:$0xff] %v940
          %1015 = vst [vmem:[%s285 + $0x10] sm:$0xff] %v945
          %1016 = vst [vmem:[%s285 + $0x18] sm:$0xff] %v950
          %1017 = vst [vmem:[%s285 + $0x20] sm:$0xff] %v955
          %1018 = vst [vmem:[%s285 + $0x28] sm:$0xff] %v960
          %1019 = vst [vmem:[%s285 + $0x30] sm:$0xff] %v965
          %1020 = vst [vmem:[%s285 + $0x38] sm:$0xff] %v970
          %1021 = vst [vmem:[%s285 + $0x40] sm:$0xff] %v975
          %1022 = vst [vmem:[%s285 + $0x48] sm:$0xff] %v980
          %1023 = vst [vmem:[%s285 + $0x50] sm:$0xff] %v985
          %1024 = vst [vmem:[%s285 + $0x58] sm:$0xff] %v990
          %1025 = vst [vmem:[%s285 + $0x60] sm:$0xff] %v995
          %1026 = vst [vmem:[%s285 + $0x68] sm:$0xff] %v1000
          %1027 = vst [vmem:[%s285 + $0x70] sm:$0xff] %v1005
          %1028 = vst [vmem:[%s285 + $0x78] sm:$0xff] %v1010
        $region56: #{tpu_custom_call.1} parent=35 // pred_fallthru
          _
        %s1029 = sand.u32 %s140, 1
        %s1030 = scalar_lea.sflag [#allocation6], %s1029
        %s1031 = sand.u32 %s140, 1
        %s1032 = smul.addr %s1031, 128
        %s1033 = scalar_lea.vmem [#allocation10], %s1032
        // Predicated region
        $region57: #{tpu_custom_call.1} parent=35 // pred_check
          %p1034 = pneg %p150
        $region58: #{tpu_custom_call.1} parent=35 // pred_check_branch
          %1036 = sbr.rel (%p1034) target = $region60
        $region59: #{tpu_custom_call.1} parent=35 // pred_region
          %s1037 = smul.u32 16, %s28
          %s1039 = ssub.s32 2048, 2048
          %1040 = vsyncadd %s1030, %s1039
          %s1041 = smul.addr %s1037, 128
          %s1042 = scalar_lea.hbm %s4, %s1041
          %s1043 = sshll.u32 %s1033, 4
          %s1044 = int_to_ptr.vmem [resolvable:$true] %s1043
          %1049 = dma.vmem_to_hbm [thread:$0]  %s1044, 2048, %s1042, %s1030, 128, 128, 8
        $region60: #{tpu_custom_call.1} parent=35 // pred_fallthru
          _
      $region36: #{tpu_custom_call.1} parent=5 // pred_fallthru
        _
      %p1050 = scmp.le.s32.totalorder 2, %s19
      // Predicated region
      $region61: #{tpu_custom_call.1} parent=5 // pred_check
        %p1051 = pneg %p1050
      $region62: #{tpu_custom_call.1} parent=5 // pred_check_branch
        %1053 = sbr.rel (%p1051) target = $region64
      $region63: #{tpu_custom_call.1} parent=5 // pred_region
        %s1054 = ssub.s32 %s19, 2
        // Predicated region
        $region65: #{tpu_custom_call.1} parent=63 // pred_check
          %p1055 = pneg %p156
        $region66: #{tpu_custom_call.1} parent=63 // pred_check_branch
          %1057 = sbr.rel (%p1055) target = $region68
        $region67: #{tpu_custom_call.1} parent=63 // pred_region
          %s1058 = sand.u32 %s141, 1
          %s1059 = scalar_lea.sflag [#allocation6], %s1058
          %s1060 = sand.u32 %s141, 1
          %s1061 = smul.addr %s1060, 128
          %s1062 = scalar_lea.vmem [#allocation10], %s1061
          %1063 = dma.done %s1059, 2048
        $region68: #{tpu_custom_call.1} parent=63 // pred_fallthru
          _
      $region64: #{tpu_custom_call.1} parent=5 // pred_fallthru
        _
    $region6: #{tpu_custom_call.1} parent=1 // loop_footer
      %s23 = sadd.s32 1, %s19
    $region7: #{tpu_custom_call.1} parent=1 // loop_footer_branch
      %18 = sbr.rel target = $region3
    $region8: #{tpu_custom_call.1} parent=1 // loop_exit
      _
    %1064 = vsyncpa [#allocation5], 1
    %s1065 = scalar_lea.sflag [#allocation5], 1
    %1066 = vsyncpa %s1065, 1
    %1067 = vsyncpa [#allocation8], 1
    %s1068 = scalar_lea.sflag [#allocation8], 1
    %1069 = vsyncpa %s1068, 1
    %1070 = vsyncpa [#allocation6], 1
    %s1071 = scalar_lea.sflag [#allocation6], 1
    %1072 = vsyncpa %s1071, 1

</llo_original>
